<compile_context>
chip_gen: v7x
topology: tpu7x:2x2x1
jax: 0.10.0
libtpu: 0.0.40
codegen_flags: <defaults>
</compile_context>

<pallas_src>
import functools

import jax
import jax.numpy as jnp
from jax.experimental import pallas as pl
from jax.experimental.pallas import tpu as pltpu

LANE = 128


def lightse_kernel(x_ref, wt_ref, b_ref, o_ref, *, fields, emb,
                   aligned, lane_chunks, fields_per_chunk):
    # x_ref block: (TB, fields*emb), lane-dense flattened (field, embedding).
    if aligned:
        # ---- field mean via aligned 128-lane partial sums -------------------
        acc128 = x_ref[:, 0:LANE].astype(jnp.float32)            # (TB, 128) f32
        for c in range(1, lane_chunks):
            acc128 = acc128 + x_ref[:, c * LANE:(c + 1) * LANE].astype(jnp.float32)
        accE = acc128[:, 0:emb]                                   # fold 128 -> E
        for f in range(1, fields_per_chunk):
            accE = accE + acc128[:, f * emb:(f + 1) * emb]
        z = accE * (1.0 / fields)                                 # (TB, E) f32
    else:
        # Fallback (E does not divide 128 or F*E not a multiple of 128).
        acc = x_ref[:, 0:emb].astype(jnp.float32)
        for f in range(1, fields):
            acc = acc + x_ref[:, f * emb:(f + 1) * emb].astype(jnp.float32)
        z = acc * (1.0 / fields)

    # ---- a = softmax(z @ W^T + b) over the embedding axis -------------------
    a = jnp.dot(z, wt_ref[...], preferred_element_type=jnp.float32) + b_ref[...]
    a = a - jnp.max(a, axis=-1, keepdims=True)
    ea = jnp.exp(a)
    inv = pl.reciprocal(jnp.sum(ea, axis=-1, keepdims=True), approx=True)
    gate_e = 1.0 + ea * inv                                       # (TB, E) f32

    # ---- out = x * (1 + a), applied in aligned 128-lane chunks --------------
    # Gate is only 128 lanes wide; each chunk slice is vreg-tile aligned
    # (zero-cost view, unmasked store).  Math in f32, single cast at the store.
    if aligned:
        gate128 = jnp.concatenate([gate_e] * fields_per_chunk, axis=-1)  # (TB, 128)
        for c in range(lane_chunks):
            sl = slice(c * LANE, (c + 1) * LANE)
            o_ref[:, sl] = (x_ref[:, sl].astype(jnp.float32) * gate128).astype(o_ref.dtype)
    else:
        for f in range(fields):
            sl = slice(f * emb, (f + 1) * emb)
            o_ref[:, sl] = (x_ref[:, sl].astype(jnp.float32) * gate_e).astype(o_ref.dtype)


def _chip_budget():
    """(target_block_bytes, vmem_limit_cap, min_grid) for this TPU generation."""
    vmem_cap = 128 * 1024 * 1024
    try:
        info = pltpu.get_tpu_info()
        vmem_cap = int(getattr(info, "vmem_capacity_bytes", vmem_cap))
    except Exception:
        pass
    if vmem_cap <= 64 * 1024 * 1024:
        # v7x: 64 MiB/TC physical VMEM, 2 TCs -> smaller blocks, >=4 grid steps.
        return 3 * 1024 * 1024, 48 * 1024 * 1024, 4
    # v5e / v6e: 128 MiB physical VMEM, 1 TC.
    return 6 * 1024 * 1024, 64 * 1024 * 1024, 2


def _choose_tb(B, row_bytes, target_block_bytes, min_grid):
    """Pick the batch tile.  Preference order: no padding, then >= min_grid grid
    steps (when the batch allows it), then the largest tile near the target
    block size.  Returns (tb, n_blocks, b_pad)."""
    target_rows = max(8, (int(target_block_bytes) // max(int(row_bytes), 1)) // 8 * 8)

    if B < 8:
        # A block whose extent equals the full array dim is always legal and
        # needs no padding.
        return B, 1, B

    b_pad8 = -(-B // 8) * 8
    max_blocks = b_pad8 // 8
    candidates = []
    for tb in range(8, min(target_rows, b_pad8) + 1, 8):
        b_pad = -(-B // tb) * tb
        candidates.append((tb, b_pad // tb, b_pad))
    if B % 8 != 0 and B * row_bytes <= 2 * target_block_bytes:
        # Whole batch as one full-extent block: avoids pad/slice HBM traffic.
        candidates.append((B, 1, B))

    def key(c):
        tb, nb, b_pad = c
        needs_pad = 1 if b_pad != B else 0
        enough_grid = 1 if (nb >= min_grid or max_blocks < min_grid) else 0
        return (needs_pad, -enough_grid, -tb)

    tb, nb, b_pad = min(candidates, key=key)
    return tb, nb, b_pad


def lightse(x, w, b):
    """x: (B, F, E); w: (E, E) torch.nn.Linear layout (out, in); b: (E,).

    Returns (B, F*E), matching torch.flatten(x + x * a.unsqueeze(1), start_dim=1).
    """
    B, F, E = x.shape
    FE = F * E

    # Hoist transpose + cast out of the kernel (one-time XLA ops).
    wt = jnp.asarray(w, dtype=jnp.float32).T               # (in=E, out=E)
    b2 = jnp.asarray(b, dtype=jnp.float32).reshape(1, E)

    # Flat lane-dense view of x (row-major -> free reshape).
    x_flat = x.reshape(B, FE)

    target_block_bytes, vmem_cap_limit, min_grid = _chip_budget()
    itemsize = x.dtype.itemsize
    row_bytes = FE * itemsize
    tb, n_blocks, b_pad = _choose_tb(B, row_bytes, target_block_bytes, min_grid)
    if b_pad != B:
        # Only taken when no multiple-of-8 divisor of B is usable.
        x_flat = jnp.pad(x_flat, ((0, b_pad - B), (0, 0)))

    aligned = (FE % LANE == 0) and (LANE % E == 0)
    lane_chunks = FE // LANE if aligned else 0
    fields_per_chunk = LANE // E if aligned else 0

    kernel = functools.partial(
        lightse_kernel, fields=F, emb=E, aligned=aligned,
        lane_chunks=lane_chunks, fields_per_chunk=fields_per_chunk)

    # VMEM budget: 2x double-buffered input + 2x output blocks + small temps.
    needed = 4 * tb * FE * itemsize + (2 << 20)
    vmem_limit = int(min(vmem_cap_limit, max(needed, 16 << 20)))
    # TODO(synk): if a single 8-row block ever exceeds the per-chip VMEM cap
    # (enormous F*E), the F*E axis itself would need tiling.

    out = pl.pallas_call(
        kernel,
        out_shape=jax.ShapeDtypeStruct((b_pad, FE), x.dtype),
        grid_spec=pltpu.PrefetchScalarGridSpec(
            num_scalar_prefetch=0,
            grid=(n_blocks,),
            in_specs=[
                pl.BlockSpec((tb, FE), lambda i: (i, 0)),   # x tile, lane-dense
                pl.BlockSpec((E, E), lambda i: (0, 0)),     # resident W^T
                pl.BlockSpec((1, E), lambda i: (0, 0)),     # resident bias
            ],
            out_specs=pl.BlockSpec((tb, FE), lambda i: (i, 0)),
        ),
        compiler_params=pltpu.CompilerParams(
            dimension_semantics=("parallel",),
            vmem_limit_bytes=vmem_limit,
        ),
    )(x_flat, wt, b2)

    return out[:B] if b_pad != B else out


def lightse_ref(x, w, b):
    """Pure-JAX reference mirroring the PyTorch forward."""
    z = jnp.mean(x, axis=1)                                 # (B, E)
    a = z @ w.T + b                                         # (B, E)
    a = jax.nn.softmax(a, axis=1)
    out = x * a[:, None, :]
    return (x + out).reshape(x.shape[0], -1)


if __name__ == "__main__":
    B, F, E = 2, 4, 32     # batch=2, fields=4, in_features = E = 32

    key = jax.random.PRNGKey(0)
    kx, kw, kb = jax.random.split(key, 3)

    x = jax.random.normal(kx, (B, F, E), dtype=jnp.float32)
    # deterministic Linear(in_features=E, out_features=E) params
    bound = 1.0 / jnp.sqrt(E)
    w = jax.random.uniform(kw, (E, E), minval=-bound, maxval=bound, dtype=jnp.float32)
    b = jax.random.uniform(kb, (E,), minval=-bound, maxval=bound, dtype=jnp.float32)

    out = jax.block_until_ready(lightse(x, w, b))
    ref = lightse_ref(x, w, b)

    assert out.shape == (B, F * E), out.shape
    # 1e-4 tolerance: the softmax denominator uses the EUP approximate
    # reciprocal (pl.reciprocal(approx=True)); everything else is f32-exact.
    assert jnp.allclose(out, ref, atol=1e-4, rtol=1e-4), "mismatch vs reference"

    print("KERNEL_OK")
</pallas_src>

<mosaic_0001>
module attributes {stable_mosaic.version = 11 : i64} {
  func.func @lightse_kernel(%arg0: i32, %arg1: memref<2x128xf32, #tpu.memory_space<vmem>>, %arg2: memref<32x32xf32, #tpu.memory_space<vmem>>, %arg3: memref<1x32xf32, #tpu.memory_space<vmem>>, %arg4: memref<2x128xf32, #tpu.memory_space<vmem>>) attributes {dimension_semantics = [#tpu.dimension_semantics<parallel>], iteration_bounds = array<i64: 1>, scalar_prefetch = 0 : i64, scratch_operands = 0 : i64, tpu.core_type = #tpu.core_type<tc>, window_params = [{transform_indices = @transform_0, window_bounds = array<i64: 2, 128>}, {pipeline_mode = #tpu.pipeline_mode<synchronous>, transform_indices = @transform_1, window_bounds = array<i64: 32, 32>}, {pipeline_mode = #tpu.pipeline_mode<synchronous>, transform_indices = @transform_2, window_bounds = array<i64: 1, 32>}, {transform_indices = @transform_3, window_bounds = array<i64: 2, 128>}]} {
    %c0 = arith.constant 0 : index
    %c0_0 = arith.constant 0 : index
    %0 = vector.load %arg1[%c0, %c0_0] : memref<2x128xf32, #tpu.memory_space<vmem>>, vector<2x128xf32>
    %1 = vector.extract_strided_slice %0 {offsets = [0, 0], sizes = [2, 32], strides = [1, 1]} : vector<2x128xf32> to vector<2x32xf32>
    %2 = vector.extract_strided_slice %0 {offsets = [0, 32], sizes = [2, 32], strides = [1, 1]} : vector<2x128xf32> to vector<2x32xf32>
    %3 = arith.addf %1, %2 : vector<2x32xf32>
    %4 = vector.extract_strided_slice %0 {offsets = [0, 64], sizes = [2, 32], strides = [1, 1]} : vector<2x128xf32> to vector<2x32xf32>
    %5 = arith.addf %3, %4 : vector<2x32xf32>
    %6 = vector.extract_strided_slice %0 {offsets = [0, 96], sizes = [2, 32], strides = [1, 1]} : vector<2x128xf32> to vector<2x32xf32>
    %7 = arith.addf %5, %6 : vector<2x32xf32>
    %cst = arith.constant 2.500000e-01 : f32
    %8 = vector.broadcast %cst : f32 to vector<2x32xf32>
    %9 = arith.mulf %7, %8 : vector<2x32xf32>
    %c0_1 = arith.constant 0 : index
    %c0_2 = arith.constant 0 : index
    %10 = vector.load %arg2[%c0_1, %c0_2] : memref<32x32xf32, #tpu.memory_space<vmem>>, vector<32x32xf32>
    %cst_3 = arith.constant dense<0.000000e+00> : vector<2x32xf32>
    %11 = tpu.matmul %9, %10, %cst_3 {dimension_numbers = #tpu.dot_dimension_numbers<[1], [0], [0], [1], [0, 0, 1, 1], [], []>} : vector<2x32xf32>, vector<32x32xf32>, vector<2x32xf32> -> vector<2x32xf32>
    %c0_4 = arith.constant 0 : index
    %c0_5 = arith.constant 0 : index
    %12 = vector.load %arg3[%c0_4, %c0_5] : memref<1x32xf32, #tpu.memory_space<vmem>>, vector<1x32xf32>
    %13 = vector.broadcast %12 : vector<1x32xf32> to vector<2x32xf32>
    %14 = arith.addf %11, %13 : vector<2x32xf32>
    %cst_6 = arith.constant dense<0xFF800000> : vector<2xf32>
    %15 = vector.multi_reduction <maximumf>, %14, %cst_6 [1] : vector<2x32xf32> to vector<2xf32>
    %16 = vector.shape_cast %15 : vector<2xf32> to vector<2x1xf32>
    %17 = vector.broadcast %16 : vector<2x1xf32> to vector<2x32xf32>
    %18 = arith.subf %14, %17 : vector<2x32xf32>
    %19 = math.exp %18 : vector<2x32xf32>
    %cst_7 = arith.constant dense<0.000000e+00> : vector<2xf32>
    %20 = vector.multi_reduction <add>, %19, %cst_7 [1] : vector<2x32xf32> to vector<2xf32>
    %21 = vector.shape_cast %20 : vector<2xf32> to vector<2x1xf32>
    %22 = tpu.reciprocal %21 {approx = true} : vector<2x1xf32> -> vector<2x1xf32>
    %23 = vector.broadcast %22 : vector<2x1xf32> to vector<2x32xf32>
    %24 = arith.mulf %19, %23 : vector<2x32xf32>
    %cst_8 = arith.constant 1.000000e+00 : f32
    %25 = vector.broadcast %cst_8 : f32 to vector<2x32xf32>
    %26 = arith.addf %25, %24 : vector<2x32xf32>
    %27 = tpu.concatenate %26, %26, %26, %26 in 1 : vector<2x32xf32>, vector<2x32xf32>, vector<2x32xf32>, vector<2x32xf32> -> vector<2x128xf32>
    %c0_9 = arith.constant 0 : index
    %c0_10 = arith.constant 0 : index
    %28 = vector.load %arg1[%c0_9, %c0_10] : memref<2x128xf32, #tpu.memory_space<vmem>>, vector<2x128xf32>
    %29 = arith.mulf %28, %27 : vector<2x128xf32>
    %c0_11 = arith.constant 0 : index
    %c0_12 = arith.constant 0 : index
    %30 = vector.load %arg4[%c0_11, %c0_12] : memref<2x128xf32, #tpu.memory_space<vmem>>, vector<2x128xf32>
    tpu.vector_store %arg4[%c0_11, %c0_12], %29 {strides = array<i32>} : memref<2x128xf32, #tpu.memory_space<vmem>>, vector<2x128xf32>,
    return
  }
  func.func @transform_0(%arg0: i32) -> (i32, i32) {
    %c0_i32 = arith.constant 0 : i32
    %c0_i32_0 = arith.constant 0 : i32
    return %arg0, %c0_i32 : i32, i32
  }
  func.func @transform_1(%arg0: i32) -> (i32, i32) {
    %c0_i32 = arith.constant 0 : i32
    %c0_i32_0 = arith.constant 0 : i32
    %c0_i32_1 = arith.constant 0 : i32
    return %c0_i32, %c0_i32_0 : i32, i32
  }
  func.func @transform_2(%arg0: i32) -> (i32, i32) {
    %c0_i32 = arith.constant 0 : i32
    %c0_i32_0 = arith.constant 0 : i32
    %c0_i32_1 = arith.constant 0 : i32
    return %c0_i32, %c0_i32_0 : i32, i32
  }
  func.func @transform_3(%arg0: i32) -> (i32, i32) {
    %c0_i32 = arith.constant 0 : i32
    %c0_i32_0 = arith.constant 0 : i32
    return %arg0, %c0_i32 : i32, i32
  }
}

</mosaic_0001>

<llo_original>
// kernel: tpu_custom_call.1
$region0: #{tpu_custom_call.1}
  #allocation0 [shape = 'u32[]', space=smem, size = 0x4, offset = 0x4, fixed_abs, tag = 'smem constant byte address 0x4 - core index']
  #allocation1 [shape = 'u32[144,128]{1,0:T(1,128)}', space=vmem, size = 0x12000, scoped, tag = 'internal scratch']
  %s0 = inlined_call_operand.hbm [shape: f32[2,128], index: 0, kind: input, shape index: {}]
  %s1 = inlined_call_operand.hbm [shape: f32[32,32], index: 1, kind: input, shape index: {}]
  %s2 = inlined_call_operand.vmem [shape: f32[1,32], index: 2, kind: input, shape index: {}]
  %s3 = inlined_call_operand.hbm [shape: f32[2,128], index: 3, kind: output, shape index: {}]
  %s4 = sld [smem:[#allocation0]]
  $region30: #{tpu_custom_call.1} parent=0
    _
  %s6 = ssub.s32 1, %s4
  %s7 = scalar_select 0, %s6, %s4
  $region1: #{tpu_custom_call.1} parent=0
    #allocation2 [shape = 'u8[1024]{0}', space=vmem, size = 0x400, scoped, tag = 'input window, operand 0, single buffered']
    #allocation3 [shape = 's32[1]{0}', space=sflag, size = 0x4, scoped, tag = 'scoped memory for tpu_custom_call.1']
    #allocation4 [shape = 's32[1]{0}', space=sflag, size = 0x4, scoped, tag = 'scoped memory for tpu_custom_call.1']
    #allocation5 [shape = 'u8[16384]{0}', space=vmem, size = 0x4000, scoped, tag = 'input window, operand 1, single buffered']
    #allocation6 [shape = 's32[1]{0}', space=sflag, size = 0x4, scoped, tag = 'scoped memory for tpu_custom_call.1']
    #allocation7 [shape = 'u8[1024]{0}', space=vmem, size = 0x400, scoped, tag = 'output window, operand 0, single buffered']
    %8 = vsyncpa [#allocation3], 0
    %9 = vsyncpa [#allocation6], 0
    %10 = vsyncpa [#allocation4], 0
    // Predicated region
    $region2: #{tpu_custom_call.1} parent=1 // pred_check
      _
    $region3: #{tpu_custom_call.1} parent=1 // pred_check_branch
      %12 = sbr.rel (0) target = $region5
    $region4: #{tpu_custom_call.1} parent=1 // pred_region
      %s14 = ssub.s32 32, 32
      %15 = vsyncadd [#allocation3], %s14
      %s17 = sshll.u32 [#allocation2], 4
      %s18 = int_to_ptr.vmem [resolvable:$true] %s17
      %20 = dma.hbm_to_vmem [thread:$0]  %s0, 32, %s18, [#allocation3]
    $region5: #{tpu_custom_call.1} parent=1 // pred_fallthru
      _
    // Predicated region
    $region6: #{tpu_custom_call.1} parent=1 // pred_check
      _
    $region7: #{tpu_custom_call.1} parent=1 // pred_check_branch
      %22 = sbr.rel (0) target = $region9
    $region8: #{tpu_custom_call.1} parent=1 // pred_region
      %s24 = ssub.s32 512, 512
      %25 = vsyncadd [#allocation6], %s24
      %s26 = sshll.u32 [#allocation5], 4
      %s27 = int_to_ptr.vmem [resolvable:$true] %s26
      %32 = dma.hbm_to_vmem [thread:$0]  %s1, 512, %s27, [#allocation6], 128, 128, 8
    $region9: #{tpu_custom_call.1} parent=1 // pred_fallthru
      _
    // Predicated region
    $region10: #{tpu_custom_call.1} parent=1 // pred_check
      _
    $region11: #{tpu_custom_call.1} parent=1 // pred_check_branch
      %34 = sbr.rel (0) target = $region13
    $region12: #{tpu_custom_call.1} parent=1 // pred_region
      _
    $region13: #{tpu_custom_call.1} parent=1 // pred_fallthru
      _
    // Predicated region
    $region14: #{tpu_custom_call.1} parent=1 // pred_check
      _
    $region15: #{tpu_custom_call.1} parent=1 // pred_check_branch
      %36 = sbr.rel (0) target = $region17
    $region16: #{tpu_custom_call.1} parent=1 // pred_region
      %37 = dma.done [#allocation3], 32
    $region17: #{tpu_custom_call.1} parent=1 // pred_fallthru
      _
    // Predicated region
    $region18: #{tpu_custom_call.1} parent=1 // pred_check
      _
    $region19: #{tpu_custom_call.1} parent=1 // pred_check_branch
      %39 = sbr.rel (0) target = $region21
    $region20: #{tpu_custom_call.1} parent=1 // pred_region
      %40 = dma.done [#allocation6], 512
    $region21: #{tpu_custom_call.1} parent=1 // pred_fallthru
      _
    %v41 = vld [vmem:[#allocation2] sm:$0x3]
    %43 = vrot.lane.b32.xlu0 %v41, 96
    %v44 = vpop.permute.xlu0 %43
    %v46 = vadd.f32 %v41, %v44
    %47 = vrot.lane.b32.xlu0 %v41, 64
    %v48 = vpop.permute.xlu0 %47
    %v50 = vadd.f32 %v46, %v48
    %51 = vrot.lane.b32.xlu0 %v41, 32
    %v52 = vpop.permute.xlu0 %51
    %v54 = vadd.f32 %v50, %v52
    %v55 = vmul.f32 %v54, 0.25
    %v56 = vld [vmem:[#allocation5] sm:$0xff]
    %v57 = vld [vmem:[#allocation5 + $0x8] sm:$0xff]
    %v58 = vld [vmem:[#allocation5 + $0x10] sm:$0xff]
    %v59 = vld [vmem:[#allocation5 + $0x18] sm:$0xff]
    %v60 = vld [vmem:[%s2] sm:$0x1]
    %v62 = vlaneseq
    %v63 = vshrl.u32 %v62, 7
    %v64 = vsub.s32 0, %v63
    %v65 = vrot.slane %v60, %v64
    %vm67 = vcmask 261120
    %v69 = vsel %vm67, %v55, 0
    %71 = vmatprep.subr.mxu0 0.0
    %72 = vmatpush1.msra.mxu0 %v56
    %73 = vmatprep.subr.mxu0 0.0
    %74 = vmatpush1.msra.mxu0 %v57
    %75 = vmatprep.subr.mxu0 0.0
    %76 = vmatpush1.msra.mxu0 %v58
    %77 = vmatprep.subr.mxu0 0.0
    %78 = vmatpush1.msra.mxu0 %v59
    %79 = vmatprep.subr.mxu0 0.0
    %80 = vmatpush1.msra.mxu0 0.0
    %81 = vmatprep.subr.mxu0 0.0
    %82 = vmatpush1.msra.mxu0 0.0
    %83 = vmatprep.subr.mxu0 0.0
    %84 = vmatpush1.msra.mxu0 0.0
    %85 = vmatprep.subr.mxu0 0.0
    %86 = vmatpush1.msra.mxu0 0.0
    %87 = vmatprep.subr.mxu0 0.0
    %88 = vmatpush1.msra.mxu0 0.0
    %89 = vmatprep.subr.mxu0 0.0
    %90 = vmatpush1.msra.mxu0 0.0
    %91 = vmatprep.subr.mxu0 0.0
    %92 = vmatpush1.msra.mxu0 0.0
    %93 = vmatprep.subr.mxu0 0.0
    %94 = vmatpush1.msra.mxu0 0.0
    %95 = vmatprep.subr.mxu0 0.0
    %96 = vmatpush1.msra.mxu0 0.0
    %97 = vmatprep.subr.mxu0 0.0
    %98 = vmatpush1.msra.mxu0 0.0
    %99 = vmatprep.subr.mxu0 0.0
    %100 = vmatpush1.msra.mxu0 0.0
    %101 = vmatprep.subr.mxu0 0.0
    %102 = vmatpush1.msra.mxu0 0.0
    %103 = vmatprep.subr.mxu0 0.0
    %104 = vmatpush1.msra.mxu0 0.0
    %105 = vmatprep.subr.mxu0 0.0
    %106 = vmatpush1.msra.mxu0 0.0
    %107 = vmatprep.subr.mxu0 0.0
    %108 = vmatpush1.msra.mxu0 0.0
    %109 = vmatprep.subr.mxu0 0.0
    %110 = vmatpush1.msra.mxu0 0.0
    %111 = vmatprep.subr.mxu0 0.0
    %112 = vmatpush1.msra.mxu0 0.0
    %113 = vmatprep.subr.mxu0 0.0
    %114 = vmatpush1.msra.mxu0 0.0
    %115 = vmatprep.subr.mxu0 0.0
    %116 = vmatpush1.msra.mxu0 0.0
    %117 = vmatprep.subr.mxu0 0.0
    %118 = vmatpush1.msra.mxu0 0.0
    %119 = vmatprep.subr.mxu0 0.0
    %120 = vmatpush1.msra.mxu0 0.0
    %121 = vmatprep.subr.mxu0 0.0
    %122 = vmatpush1.msra.mxu0 0.0
    %123 = vmatprep.subr.mxu0 0.0
    %124 = vmatpush1.msra.mxu0 0.0
    %125 = vmatprep.subr.mxu0 0.0
    %126 = vmatpush1.msra.mxu0 0.0
    %127 = vmatprep.subr.mxu0 0.0
    %128 = vmatpush1.msra.mxu0 0.0
    %129 = vmatprep.subr.mxu0 0.0
    %130 = vmatpush1.msra.mxu0 0.0
    %131 = vmatprep.subr.mxu0 0.0
    %132 = vmatpush1.msra.mxu0 0.0
    %133 = vmatprep.subr.mxu0 0.0
    %134 = vmatpush1.msra.mxu0 0.0
    %135 = vmatprep.mubr.f32.mxu0 0.0
    %136 = vmatmul.mubr.f32.gmra.mrb[0].mxu0 %v69
    %v137 = vpop.f32.mrb[0].mxu0
    %v138 = vadd.f32 %v65, %v137
    %v139 = vpop.f32.mrb[0].mxu0
    %140 = vdwg.mxu0
    %vm141 = vcmask 254976
    %v142 = vsel %vm141, %v138, -inf
    %143 = vmax.xlane.f32.xlu0 %v142
    %v144 = vpop.xlane.xlu0 %143
    %v145 = vsub.f32 %v138, %v144
    %v146 = vmul.f32 %v145, 1.442695
    %v147 = vpow.pop %v146
    %v148 = vsel %vm141, %v147, 0.0
    %149 = vadd.xlane.f32.xlu0 %v148
    %v150 = vpop.xlane.xlu0 %149
    %v151 = vrcp.pop %v150
    %v152 = vmul.f32 %v147, %v151
    %v153 = vadd.f32 %v152, 1.0
    %155 = vrot.lane.b32.xlu0 %v153, 32
    %v156 = vpop.permute.xlu0 %155
    %158 = vrot.lane.b32.xlu0 %v153, 64
    %v159 = vpop.permute.xlu0 %158
    %161 = vrot.lane.b32.xlu0 %v153, 96
    %v162 = vpop.permute.xlu0 %161
    %v164 = vsel %vm67, %v153, %v156
    %vm165 = vcmask 523264
    %v166 = vsel %vm165, %v164, %v159
    %vm167 = vcmask 785408
    %v168 = vsel %vm167, %v166, %v162
    %v169 = vmul.f32 %v41, %v168
    %170 = vst [vmem:[#allocation7] sm:$0x3] %v169
    // Predicated region
    $region22: #{tpu_custom_call.1} parent=1 // pred_check
      _
    $region23: #{tpu_custom_call.1} parent=1 // pred_check_branch
      %172 = sbr.rel (0) target = $region25
    $region24: #{tpu_custom_call.1} parent=1 // pred_region
      %s174 = ssub.s32 32, 32
      %175 = vsyncadd [#allocation4], %s174
      %s177 = sshll.u32 [#allocation7], 4
      %s178 = int_to_ptr.vmem [resolvable:$true] %s177
      %180 = dma.vmem_to_hbm [thread:$0]  %s178, 32, %s3, [#allocation4]
    $region25: #{tpu_custom_call.1} parent=1 // pred_fallthru
      _
    // Predicated region
    $region26: #{tpu_custom_call.1} parent=1 // pred_check
      _
    $region27: #{tpu_custom_call.1} parent=1 // pred_check_branch
      %182 = sbr.rel (0) target = $region29
    $region28: #{tpu_custom_call.1} parent=1 // pred_region
      %183 = dma.done [#allocation4], 32
    $region29: #{tpu_custom_call.1} parent=1 // pred_fallthru
      _
    %184 = vsyncpa [#allocation3], 1
    %185 = vsyncpa [#allocation6], 1
    %186 = vsyncpa [#allocation4], 1

</llo_original>
